<compile_context>
chip_gen: v6e
topology: v6e:2x2x1
jax: 0.10.0
libtpu: 0.0.40
codegen_flags: <defaults>
</compile_context>

<pallas_src>
import functools

import jax
import jax.numpy as jnp
from jax.experimental import pallas as pl
from jax.experimental.pallas import tpu as pltpu

MAX_SPATIAL_TILE = 4096  # lanes of spatial (D*H*W) processed per grid step


def _round_up(x, m):
    return -(-x // m) * m


def _plan_spatial(s):
    """Pick (padded spatial extent, spatial tile) — tile is lane-dense (%128)."""
    s_pad = _round_up(s, 128)
    if s_pad <= MAX_SPATIAL_TILE:
        return s_pad, s_pad
    s_pad = _round_up(s_pad, MAX_SPATIAL_TILE)
    return s_pad, MAX_SPATIAL_TILE


def _moco_fused_kernel(x_ref, w_ref, b_ref, q_ref, k_ref, *, feat):
    # x_ref: (1, C, TS)   w_ref: (2F, C)   b_ref: (2F, 1)   q/k_ref: (1, F, TS)
    x = x_ref[0]                                                    # (C, TS)

    # Single MXU matmul produces both q and k features: (2F, C) @ (C, TS).
    y = jnp.dot(w_ref[...], x, preferred_element_type=jnp.float32)  # (2F, TS)
    y = y + b_ref[...]

    yq = y[:feat]                 # sublane-aligned slices (feat % 8 == 0)
    yk = y[feat:]

    # torch F.normalize(dim=1): x / max(||x||_2, 1e-12).  Feature-axis sum of
    # squares is a sublane reduction; rsqrt runs on the EUP slot.
    ssq = jnp.sum(yq * yq, axis=0, keepdims=True)                   # (1, TS)
    ssk = jnp.sum(yk * yk, axis=0, keepdims=True)                   # (1, TS)
    q_ref[0] = (yq * jax.lax.rsqrt(jnp.maximum(ssq, 1e-24))).astype(q_ref.dtype)
    k_ref[0] = (yk * jax.lax.rsqrt(jnp.maximum(ssk, 1e-24))).astype(k_ref.dtype)


def fused_encode_normalize(x3, wq, bq, wk, bk):
    """x3: (B, C, S). w*: (F, C), b*: (F,). Returns (q3, k3): (B, F, S), unit-norm over F."""
    B, C, S = x3.shape
    F = wq.shape[0]
    F_pad = _round_up(F, 8)       # keep sublane-aligned feature halves
    S_pad, TS = _plan_spatial(S)
    if S_pad != S:
        # zero-pad spatial; padded columns normalize harmlessly and are sliced off.
        x3 = jnp.pad(x3, ((0, 0), (0, 0), (0, S_pad - S)))
    n_s = S_pad // TS

    def pad_f(w, b):
        if F_pad != F:
            w = jnp.pad(w, ((0, F_pad - F), (0, 0)))
            b = jnp.pad(b, ((0, F_pad - F),))
        return w, b

    wq_p, bq_p = pad_f(wq, bq)
    wk_p, bk_p = pad_f(wk, bk)
    w_all = jnp.concatenate([wq_p, wk_p], axis=0)                       # (2F, C)
    b_all = jnp.concatenate([bq_p, bk_p], axis=0).reshape(2 * F_pad, 1)  # (2F, 1)

    cost = pl.CostEstimate(
        flops=2 * B * S_pad * C * (2 * F_pad) + 6 * B * S_pad * F_pad,
        transcendentals=2 * B * S_pad,
        bytes_accessed=4 * (B * C * S_pad + 2 * B * F_pad * S_pad
                            + 2 * F_pad * C + 2 * F_pad),
    )

    grid_spec = pl.GridSpec(
        grid=(B, n_s),
        in_specs=[
            pl.BlockSpec((1, C, TS), lambda b, j: (b, 0, j)),      # x tile
            pl.BlockSpec((2 * F_pad, C), lambda b, j: (0, 0)),     # stacked W
            pl.BlockSpec((2 * F_pad, 1), lambda b, j: (0, 0)),     # stacked b
        ],
        out_specs=(
            pl.BlockSpec((1, F_pad, TS), lambda b, j: (b, 0, j)),  # q tile
            pl.BlockSpec((1, F_pad, TS), lambda b, j: (b, 0, j)),  # k tile
        ),
    )

    q3, k3 = pl.pallas_call(
        functools.partial(_moco_fused_kernel, feat=F_pad),
        out_shape=(
            jax.ShapeDtypeStruct((B, F_pad, S_pad), jnp.float32),
            jax.ShapeDtypeStruct((B, F_pad, S_pad), jnp.float32),
        ),
        grid_spec=grid_spec,
        compiler_params=pltpu.CompilerParams(
            dimension_semantics=("parallel", "parallel")),
        cost_estimate=cost,
    )(x3, w_all, b_all)

    if F_pad != F or S_pad != S:
        q3 = q3[:, :F, :S]
        k3 = k3[:, :F, :S]
    return q3, k3


class MoCoPallas:
    """MoCo.forward: returns (q, k), both L2-normalized encoder features."""

    def __init__(self, in_channels, dim=32, m=0.999, T=0.07, seed=0):
        self.m = m
        self.T = T
        self.F = dim
        self.C = in_channels
        key = jax.random.PRNGKey(seed)
        kw, kb = jax.random.split(key)
        # encoder_q: 1x1x1 Conv3d (C -> F); weight stored directly as (F, C).
        bound = 1.0 / jnp.sqrt(in_channels)
        self.wq = jax.random.uniform(kw, (dim, in_channels),
                                     minval=-bound, maxval=bound,
                                     dtype=jnp.float32)
        self.bq = jax.random.uniform(kb, (dim,),
                                     minval=-bound, maxval=bound,
                                     dtype=jnp.float32)
        # encoder_k initialized as a copy of encoder_q (as in MoCo.__init__)
        self.wk = self.wq
        self.bk = self.bq
        # TODO(synk): queue / queue_ptr buffers are not used by forward(), so
        # they are not materialized here.

    def forward(self, im):
        B, C, D, H, W = im.shape
        x3 = im.reshape(B, C, D * H * W)  # pure reshape, no transpose

        # momentum update of key encoder (parameter glue, no_grad in torch)
        self.wk = self.wk * self.m + self.wq * (1.0 - self.m)
        self.bk = self.bk * self.m + self.bq * (1.0 - self.m)

        q3, k3 = fused_encode_normalize(x3, self.wq, self.bq, self.wk, self.bk)
        k3 = jax.lax.stop_gradient(k3)  # torch.no_grad() branch

        q = q3.reshape(B, self.F, D, H, W)
        k = k3.reshape(B, self.F, D, H, W)
        return q, k


def _reference_encode_normalize(x3, w, b):
    """Pure-JAX reference: conv1x1x1 + F.normalize(dim=1)."""
    y = jnp.einsum('fc,bcs->bfs', w, x3) + b[None, :, None]
    nrm = jnp.sqrt(jnp.sum(y * y, axis=1, keepdims=True))
    return y / jnp.maximum(nrm, 1e-12)


if __name__ == "__main__":
    # small shapes: B=2, C=4, D=H=W=8, feature dim F=32  ->  S = 512 lanes/batch
    B, C, D, H, W = 2, 4, 8, 8, 8
    dim = 32

    key = jax.random.PRNGKey(0)
    im = jax.random.normal(key, (B, C, D, H, W), dtype=jnp.float32)

    model = MoCoPallas(in_channels=C, dim=dim, m=0.999, T=0.07, seed=0)
    q, k = model.forward(im)
    q = jax.block_until_ready(q)
    k = jax.block_until_ready(k)

    # sanity: shapes and unit norm along the channel dim (dim=1), like F.normalize
    assert q.shape == (B, dim, D, H, W) and k.shape == (B, dim, D, H, W)
    qn = jnp.sqrt(jnp.sum(q * q, axis=1))
    kn = jnp.sqrt(jnp.sum(k * k, axis=1))
    assert bool(jnp.allclose(qn, 1.0, atol=1e-4))
    assert bool(jnp.allclose(kn, 1.0, atol=1e-4))

    # correctness vs pure-JAX reference
    x3 = im.reshape(B, C, D * H * W)
    q_ref = _reference_encode_normalize(x3, model.wq, model.bq).reshape(B, dim, D, H, W)
    k_ref = _reference_encode_normalize(x3, model.wk, model.bk).reshape(B, dim, D, H, W)
    assert bool(jnp.allclose(q, q_ref, atol=1e-5))
    assert bool(jnp.allclose(k, k_ref, atol=1e-5))

    print("KERNEL_OK")
</pallas_src>

<mosaic_0001>
module attributes {stable_mosaic.version = 11 : i64} {
  func.func @_moco_fused_kernel(%arg0: i32, %arg1: i32, %arg2: memref<1x4x512xf32, #tpu.memory_space<vmem>>, %arg3: memref<64x4xf32, #tpu.memory_space<vmem>>, %arg4: memref<64x1xf32, #tpu.memory_space<vmem>>, %arg5: memref<1x32x512xf32, #tpu.memory_space<vmem>>, %arg6: memref<1x32x512xf32, #tpu.memory_space<vmem>>) attributes {dimension_semantics = [#tpu.dimension_semantics<parallel>, #tpu.dimension_semantics<parallel>], iteration_bounds = array<i64: 2, 1>, scalar_prefetch = 0 : i64, scratch_operands = 0 : i64, tpu.core_type = #tpu.core_type<tc>, window_params = [{transform_indices = @transform_0, window_bounds = array<i64: 1, 4, 512>}, {pipeline_mode = #tpu.pipeline_mode<synchronous>, transform_indices = @transform_1, window_bounds = array<i64: 64, 4>}, {pipeline_mode = #tpu.pipeline_mode<synchronous>, transform_indices = @transform_2, window_bounds = array<i64: 64, 1>}, {transform_indices = @transform_3, window_bounds = array<i64: 1, 32, 512>}, {transform_indices = @transform_4, window_bounds = array<i64: 1, 32, 512>}]} {
    %c0 = arith.constant 0 : index
    %c0_0 = arith.constant 0 : index
    %c0_1 = arith.constant 0 : index
    %0 = vector.load %arg2[%c0, %c0_0, %c0_1] : memref<1x4x512xf32, #tpu.memory_space<vmem>>, vector<1x4x512xf32>
    %1 = vector.shape_cast %0 : vector<1x4x512xf32> to vector<4x512xf32>
    %c0_2 = arith.constant 0 : index
    %c0_3 = arith.constant 0 : index
    %2 = vector.load %arg3[%c0_2, %c0_3] : memref<64x4xf32, #tpu.memory_space<vmem>>, vector<64x4xf32>
    %cst = arith.constant dense<0.000000e+00> : vector<64x512xf32>
    %3 = tpu.matmul %2, %1, %cst {dimension_numbers = #tpu.dot_dimension_numbers<[1], [0], [0], [1], [0, 0, 1, 1], [], []>} : vector<64x4xf32>, vector<4x512xf32>, vector<64x512xf32> -> vector<64x512xf32>
    %c0_4 = arith.constant 0 : index
    %c0_5 = arith.constant 0 : index
    %4 = vector.load %arg4[%c0_4, %c0_5] : memref<64x1xf32, #tpu.memory_space<vmem>>, vector<64x1xf32>
    %5 = vector.broadcast %4 : vector<64x1xf32> to vector<64x512xf32>
    %6 = arith.addf %3, %5 : vector<64x512xf32>
    %7 = vector.extract_strided_slice %6 {offsets = [0, 0], sizes = [32, 512], strides = [1, 1]} : vector<64x512xf32> to vector<32x512xf32>
    %8 = vector.extract_strided_slice %6 {offsets = [32, 0], sizes = [32, 512], strides = [1, 1]} : vector<64x512xf32> to vector<32x512xf32>
    %9 = arith.mulf %7, %7 : vector<32x512xf32>
    %cst_6 = arith.constant dense<0.000000e+00> : vector<512xf32>
    %10 = vector.multi_reduction <add>, %9, %cst_6 [0] : vector<32x512xf32> to vector<512xf32>
    %11 = vector.shape_cast %10 : vector<512xf32> to vector<1x512xf32>
    %12 = arith.mulf %8, %8 : vector<32x512xf32>
    %cst_7 = arith.constant dense<0.000000e+00> : vector<512xf32>
    %13 = vector.multi_reduction <add>, %12, %cst_7 [0] : vector<32x512xf32> to vector<512xf32>
    %14 = vector.shape_cast %13 : vector<512xf32> to vector<1x512xf32>
    %cst_8 = arith.constant 1.000000e-24 : f32
    %15 = vector.broadcast %cst_8 : f32 to vector<1x512xf32>
    %16 = arith.maximumf %11, %15 : vector<1x512xf32>
    %17 = math.rsqrt %16 : vector<1x512xf32>
    %18 = vector.broadcast %17 : vector<1x512xf32> to vector<32x512xf32>
    %19 = arith.mulf %7, %18 : vector<32x512xf32>
    %c0_9 = arith.constant 0 : index
    %c0_10 = arith.constant 0 : index
    %c0_11 = arith.constant 0 : index
    %20 = vector.load %arg5[%c0_9, %c0_10, %c0_11] : memref<1x32x512xf32, #tpu.memory_space<vmem>>, vector<1x32x512xf32>
    %21 = vector.shape_cast %20 : vector<1x32x512xf32> to vector<32x512xf32>
    %22 = vector.shape_cast %19 : vector<32x512xf32> to vector<1x32x512xf32>
    tpu.vector_store %arg5[%c0_9, %c0_10, %c0_11], %22 {strides = array<i32>} : memref<1x32x512xf32, #tpu.memory_space<vmem>>, vector<1x32x512xf32>,
    %cst_12 = arith.constant 1.000000e-24 : f32
    %23 = vector.broadcast %cst_12 : f32 to vector<1x512xf32>
    %24 = arith.maximumf %14, %23 : vector<1x512xf32>
    %25 = math.rsqrt %24 : vector<1x512xf32>
    %26 = vector.broadcast %25 : vector<1x512xf32> to vector<32x512xf32>
    %27 = arith.mulf %8, %26 : vector<32x512xf32>
    %c0_13 = arith.constant 0 : index
    %c0_14 = arith.constant 0 : index
    %c0_15 = arith.constant 0 : index
    %28 = vector.load %arg6[%c0_13, %c0_14, %c0_15] : memref<1x32x512xf32, #tpu.memory_space<vmem>>, vector<1x32x512xf32>
    %29 = vector.shape_cast %28 : vector<1x32x512xf32> to vector<32x512xf32>
    %30 = vector.shape_cast %27 : vector<32x512xf32> to vector<1x32x512xf32>
    tpu.vector_store %arg6[%c0_13, %c0_14, %c0_15], %30 {strides = array<i32>} : memref<1x32x512xf32, #tpu.memory_space<vmem>>, vector<1x32x512xf32>,
    return
  }
  func.func @transform_0(%arg0: i32, %arg1: i32) -> (i32, i32, i32) {
    %c0_i32 = arith.constant 0 : i32
    %c0_i32_0 = arith.constant 0 : i32
    return %arg0, %c0_i32, %arg1 : i32, i32, i32
  }
  func.func @transform_1(%arg0: i32, %arg1: i32) -> (i32, i32) {
    %c0_i32 = arith.constant 0 : i32
    %c0_i32_0 = arith.constant 0 : i32
    %c0_i32_1 = arith.constant 0 : i32
    return %c0_i32, %c0_i32_0 : i32, i32
  }
  func.func @transform_2(%arg0: i32, %arg1: i32) -> (i32, i32) {
    %c0_i32 = arith.constant 0 : i32
    %c0_i32_0 = arith.constant 0 : i32
    %c0_i32_1 = arith.constant 0 : i32
    return %c0_i32, %c0_i32_0 : i32, i32
  }
  func.func @transform_3(%arg0: i32, %arg1: i32) -> (i32, i32, i32) {
    %c0_i32 = arith.constant 0 : i32
    %c0_i32_0 = arith.constant 0 : i32
    return %arg0, %c0_i32, %arg1 : i32, i32, i32
  }
  func.func @transform_4(%arg0: i32, %arg1: i32) -> (i32, i32, i32) {
    %c0_i32 = arith.constant 0 : i32
    %c0_i32_0 = arith.constant 0 : i32
    return %arg0, %c0_i32, %arg1 : i32, i32, i32
  }
}

</mosaic_0001>

<llo_original>
// kernel: tpu_custom_call.1
$region0: #{tpu_custom_call.1}
  #allocation0 [shape = 'u32[]', space=smem, size = 0x4, offset = 0x4, fixed_abs, tag = 'smem constant byte address 0x4 - core index']
  #allocation1 [shape = 'u32[144,128]{1,0:T(1,128)}', space=vmem, size = 0x12000, scoped, tag = 'internal scratch']
  %s0 = inlined_call_operand.vmem [shape: f32[2,4,512], index: 0, kind: input, shape index: {}]
  %s1 = inlined_call_operand.vmem [shape: f32[64,4], index: 1, kind: input, shape index: {}]
  %s2 = inlined_call_operand.vmem [shape: f32[64,1], index: 2, kind: input, shape index: {}]
  %s3 = inlined_call_operand.hbm [shape: f32[2,32,512], index: 3, kind: output, shape index: {0}]
  %s4 = inlined_call_operand.hbm [shape: f32[2,32,512], index: 4, kind: output, shape index: {1}]
  %5 = xla_tuple %s3, %s4
  %s6 = sld [smem:[#allocation0]]
  $region53: #{tpu_custom_call.1} parent=0
    _
  %s8 = ssub.s32 1, %s6
  %s9 = scalar_select 0, %s8, %s6
  $region1: #{tpu_custom_call.1} parent=0
    #allocation2 [shape = 'u8[131072]{0}', space=vmem, size = 0x20000, scoped, tag = 'output window, operand 0']
    #allocation3 [shape = 's32[2]{0}', space=sflag, size = 0x8, scoped, tag = 'scoped memory for tpu_custom_call.1']
    #allocation4 [shape = 'u8[131072]{0}', space=vmem, size = 0x20000, scoped, tag = 'output window, operand 1']
    #allocation5 [shape = 's32[2]{0}', space=sflag, size = 0x8, scoped, tag = 'scoped memory for tpu_custom_call.1']
    %10 = vsyncpa [#allocation3], 0
    %s11 = scalar_lea.sflag [#allocation3], 1
    %12 = vsyncpa %s11, 0
    %13 = vsyncpa [#allocation5], 0
    %s14 = scalar_lea.sflag [#allocation5], 1
    %15 = vsyncpa %s14, 0
    loop: start=0, step=1, limit=4
    $region2: #{tpu_custom_call.1} parent=1 // loop_pre_header
      _
    $region3: #{tpu_custom_call.1} parent=1 // loop_header
      %s17 = sphi 0, %s21
      %p18 = scmp.ge.s32.totalorder %s17, 4
      %s24 = sphi 0, %s36
      %s25 = sphi 0, %s32
      %s26 = sphi 0, %s24
      %s27 = sphi 0, %s25
      %s28 = sphi 0, %s26
      %s29 = sphi 0, %s27
      %s41 = sphi 0, %s43
      %s44 = sphi 0, %s41
      %s45 = sphi 0, %s44
      %s61 = sphi 0, %s45
      %s65 = sphi 0, %s65
      %s67 = sphi 0, %s65
      %s68 = sphi 0, %s67
      %s82 = sphi 0, %s68
      %s86 = sphi 0, %s86
      %s88 = sphi 0, %s86
      %s89 = sphi 0, %s88
      %s103 = sphi 0, %s89
      %s111 = sphi 0, %s113
      %s114 = sphi 0, %s111
      %s115 = sphi 0, %s114
      %s131 = sphi 0, %s115
      %s139 = sphi 0, %s141
      %s142 = sphi 0, %s139
      %s143 = sphi 0, %s142
      %s159 = sphi 0, %s143
    $region4: #{tpu_custom_call.1} parent=1 // loop_header_branch
      %20 = sbr.rel (%p18) target = $region8
    $region5: #{tpu_custom_call.1} parent=1 // loop_body
      %s22 = ssub.s32 %s17, 1
      %s23 = ssub.s32 %s17, 2
      %s30 = sadd.s32 1, %s25
      %p31 = scmp.ge.s32.totalorder %s30, 1
      %s32 = scalar_select %p31, 0, %s30
      %s33 = sadd.s32 1, %s24
      %s34 = scalar_select %p31, %s33, %s24
      %p35 = scmp.ge.s32.totalorder %s34, 2
      %s36 = scalar_select %p35, 0, %s34
      %s37 = ssub.s32 %s24, %s36
      %s38 = ssub.s32 %s25, %s32
      %s39 = sor.u32 %s37, %s38
      %p40 = scmp.eq.s32.totalorder %s39, 0
      %s42 = sadd.s32 %s41, 1
      %s43 = scalar_select %p40, %s41, %s42
      %p46 = pneg %p40
      %p47 = scmp.eq.s32.totalorder %s17, 1
      %p48 = por %p46, %p47
      %p49 = scmp.ne.s32.totalorder %s41, %s44
      %p50 = scmp.eq.s32.totalorder %s17, 0
      %p51 = por %p49, %p50
      %p52 = scmp.ne.s32.totalorder %s41, %s44
      %p53 = scmp.eq.s32.totalorder %s22, 1
      %p54 = por %p52, %p53
      %p55 = scmp.ne.s32.totalorder %s44, %s45
      %p56 = scmp.eq.s32.totalorder %s22, 0
      %p57 = por %p55, %p56
      %p58 = scmp.ne.s32.totalorder %s44, %s45
      %p59 = scmp.eq.s32.totalorder %s23, 1
      %p60 = por %p58, %p59
      %p62 = scmp.ne.s32.totalorder %s45, %s61
      %p63 = scmp.eq.s32.totalorder %s23, 0
      %p64 = por %p62, %p63
      %s66 = sadd.s32 %s65, 1
      %p69 = scmp.eq.s32.totalorder %s17, 1
      %p70 = scmp.ne.s32.totalorder %s65, %s67
      %p71 = scmp.eq.s32.totalorder %s17, 0
      %p72 = por %p70, %p71
      %p73 = scmp.ne.s32.totalorder %s65, %s67
      %p74 = scmp.eq.s32.totalorder %s22, 1
      %p75 = por %p73, %p74
      %p76 = scmp.ne.s32.totalorder %s67, %s68
      %p77 = scmp.eq.s32.totalorder %s22, 0
      %p78 = por %p76, %p77
      %p79 = scmp.ne.s32.totalorder %s67, %s68
      %p80 = scmp.eq.s32.totalorder %s23, 1
      %p81 = por %p79, %p80
      %p83 = scmp.ne.s32.totalorder %s68, %s82
      %p84 = scmp.eq.s32.totalorder %s23, 0
      %p85 = por %p83, %p84
      %s87 = sadd.s32 %s86, 1
      %p90 = scmp.eq.s32.totalorder %s17, 1
      %p91 = scmp.ne.s32.totalorder %s86, %s88
      %p92 = scmp.eq.s32.totalorder %s17, 0
      %p93 = por %p91, %p92
      %p94 = scmp.ne.s32.totalorder %s86, %s88
      %p95 = scmp.eq.s32.totalorder %s22, 1
      %p96 = por %p94, %p95
      %p97 = scmp.ne.s32.totalorder %s88, %s89
      %p98 = scmp.eq.s32.totalorder %s22, 0
      %p99 = por %p97, %p98
      %p100 = scmp.ne.s32.totalorder %s88, %s89
      %p101 = scmp.eq.s32.totalorder %s23, 1
      %p102 = por %p100, %p101
      %p104 = scmp.ne.s32.totalorder %s89, %s103
      %p105 = scmp.eq.s32.totalorder %s23, 0
      %p106 = por %p104, %p105
      %s107 = ssub.s32 %s24, %s36
      %s108 = ssub.s32 %s25, %s32
      %s109 = sor.u32 %s107, %s108
      %p110 = scmp.eq.s32.totalorder %s109, 0
      %s112 = sadd.s32 %s111, 1
      %s113 = scalar_select %p110, %s111, %s112
      %p116 = pneg %p110
      %p117 = scmp.eq.s32.totalorder %s17, 1
      %p118 = por %p116, %p117
      %p119 = scmp.ne.s32.totalorder %s111, %s114
      %p120 = scmp.eq.s32.totalorder %s17, 0
      %p121 = por %p119, %p120
      %p122 = scmp.ne.s32.totalorder %s111, %s114
      %p123 = scmp.eq.s32.totalorder %s22, 1
      %p124 = por %p122, %p123
      %p125 = scmp.ne.s32.totalorder %s114, %s115
      %p126 = scmp.eq.s32.totalorder %s22, 0
      %p127 = por %p125, %p126
      %p128 = scmp.ne.s32.totalorder %s114, %s115
      %p129 = scmp.eq.s32.totalorder %s23, 1
      %p130 = por %p128, %p129
      %p132 = scmp.ne.s32.totalorder %s115, %s131
      %p133 = scmp.eq.s32.totalorder %s23, 0
      %p134 = por %p132, %p133
      %s135 = ssub.s32 %s24, %s36
      %s136 = ssub.s32 %s25, %s32
      %s137 = sor.u32 %s135, %s136
      %p138 = scmp.eq.s32.totalorder %s137, 0
      %s140 = sadd.s32 %s139, 1
      %s141 = scalar_select %p138, %s139, %s140
      %p144 = pneg %p138
      %p145 = scmp.eq.s32.totalorder %s17, 1
      %p146 = por %p144, %p145
      %p147 = scmp.ne.s32.totalorder %s139, %s142
      %p148 = scmp.eq.s32.totalorder %s17, 0
      %p149 = por %p147, %p148
      %p150 = scmp.ne.s32.totalorder %s139, %s142
      %p151 = scmp.eq.s32.totalorder %s22, 1
      %p152 = por %p150, %p151
      %p153 = scmp.ne.s32.totalorder %s142, %s143
      %p154 = scmp.eq.s32.totalorder %s22, 0
      %p155 = por %p153, %p154
      %p156 = scmp.ne.s32.totalorder %s142, %s143
      %p157 = scmp.eq.s32.totalorder %s23, 1
      %p158 = por %p156, %p157
      %p160 = scmp.ne.s32.totalorder %s143, %s159
      %p161 = scmp.eq.s32.totalorder %s23, 0
      %p162 = por %p160, %p161
      %p163 = scmp.le.s32.totalorder 1, %s17
      %p164 = scmp.lt.s32.totalorder %s17, 3
      %p165 = pnand %p163, %p164
      %p166 = pneg %p165
      // Predicated region
      $region9: #{tpu_custom_call.1} parent=5 // pred_check
        _
      $region10: #{tpu_custom_call.1} parent=5 // pred_check_branch
        %168 = sbr.rel (%p165) target = $region12
      $region11: #{tpu_custom_call.1} parent=5 // pred_region
        %s169 = ssub.s32 %s17, 1
        // Predicated region
        $region13: #{tpu_custom_call.1} parent=11 // pred_check
          %p170 = pneg %p78
        $region14: #{tpu_custom_call.1} parent=11 // pred_check_branch
          %172 = sbr.rel (%p170) target = $region16
        $region15: #{tpu_custom_call.1} parent=11 // pred_region
          _
        $region16: #{tpu_custom_call.1} parent=11 // pred_fallthru
          _
        // Predicated region
        $region17: #{tpu_custom_call.1} parent=11 // pred_check
          %p173 = pneg %p99
        $region18: #{tpu_custom_call.1} parent=11 // pred_check_branch
          %175 = sbr.rel (%p173) target = $region20
        $region19: #{tpu_custom_call.1} parent=11 // pred_region
          _
        $region20: #{tpu_custom_call.1} parent=11 // pred_fallthru
          _
      $region12: #{tpu_custom_call.1} parent=5 // pred_fallthru
        _
      %p176 = scmp.lt.s32.totalorder %s17, 2
      // Predicated region
      $region21: #{tpu_custom_call.1} parent=5 // pred_check
        %p177 = pneg %p176
      $region22: #{tpu_custom_call.1} parent=5 // pred_check_branch
        %179 = sbr.rel (%p177) target = $region24
      $region23: #{tpu_custom_call.1} parent=5 // pred_region
        // Predicated region
        $region25: #{tpu_custom_call.1} parent=23 // pred_check
          %p180 = pneg %p51
        $region26: #{tpu_custom_call.1} parent=23 // pred_check_branch
          %182 = sbr.rel (%p180) target = $region28
        $region27: #{tpu_custom_call.1} parent=23 // pred_region
          %s183 = smul.u32 4, %s25
          %p184 = scmp.lt.s32.totalorder %s24, 1
          %s185 = scalar_select %p184, %s24, 1
          %p186 = scmp.lt.s32.totalorder %s183, 3
          %s187 = scalar_select %p186, %s183, 3
          %s188 = smul.addr %s185, 4
          %s189 = sadd.s32 %s187, %s188
          %s190 = smul.addr %s189, 4
          %s191 = scalar_lea.vmem %s0, %s190
          %s192 = smul.u32 4, %s25
        $region28: #{tpu_custom_call.1} parent=23 // pred_fallthru
          _
      $region24: #{tpu_custom_call.1} parent=5 // pred_fallthru
        _
      %p193 = scmp.le.s32.totalorder 1, %s17
      %p194 = scmp.lt.s32.totalorder %s17, 3
      %p195 = pnand %p193, %p194
      %p196 = pneg %p195
      // Predicated region
      $region29: #{tpu_custom_call.1} parent=5 // pred_check
        _
      $region30: #{tpu_custom_call.1} parent=5 // pred_check_branch
        %198 = sbr.rel (%p195) target = $region32
      $region31: #{tpu_custom_call.1} parent=5 // pred_region
        %s199 = ssub.s32 %s17, 1
        %s200 = smul.u32 4, %s27
        %p201 = scmp.lt.s32.totalorder %s26, 1
        %s202 = scalar_select %p201, %s26, 1
        %p203 = scmp.lt.s32.totalorder %s200, 3
        %s204 = scalar_select %p203, %s200, 3
        %s205 = smul.addr %s202, 4
        %s206 = sadd.s32 %s204, %s205
        %s207 = smul.addr %s206, 4
        %s208 = scalar_lea.vmem %s0, %s207
        %p209 = pneg %p57
        %p210 = pneg %p54
        %p211 = pneg %p78
        %p212 = pneg %p75
        %p213 = pneg %p99
        %p214 = pneg %p96
        %p215 = pneg %p127
        %p216 = pneg %p124
        %s217 = sand.u32 %s114, 1
        %s218 = scalar_lea.sflag [#allocation3], %s217
        %s219 = sand.u32 %s114, 1
        %s220 = smul.addr %s219, 128
        %s221 = scalar_lea.vmem [#allocation2], %s220
        %p222 = pneg %p155
        %p223 = pneg %p152
        %s224 = sand.u32 %s142, 1
        %s225 = scalar_lea.sflag [#allocation5], %s224
        %s226 = sand.u32 %s142, 1
        %s227 = smul.addr %s226, 128
        %s228 = scalar_lea.vmem [#allocation4], %s227
        %s229 = smul.u32 4, %s27
        %p230 = scmp.lt.s32.totalorder %s26, 1
        %s231 = scalar_select %p230, %s26, 1
        %p232 = scmp.lt.s32.totalorder %s229, 3
        %s233 = scalar_select %p232, %s229, 3
        %s234 = smul.addr %s231, 4
        %s235 = sadd.s32 %s233, %s234
        %s236 = smul.addr %s235, 4
        %s237 = scalar_lea.vmem %s0, %s236
        %s238 = smul.u32 4, %s27
        %s239 = smul.u32 4, %s27
        %s240 = smul.u32 4, %s27
        %v241 = vld [vmem:[%s237] sm:$0xff]
        %v242 = vld [vmem:[%s237 + $0x8] sm:$0xff]
        %v243 = vld [vmem:[%s1] sm:$0xff]
        %v244 = vld [vmem:[%s1 + $0x8] sm:$0xff]
        %v245 = vld [vmem:[%s1 + $0x10] sm:$0xff]
        %v246 = vld [vmem:[%s1 + $0x18] sm:$0xff]
        %v247 = vld [vmem:[%s1 + $0x20] sm:$0xff]
        %v248 = vld [vmem:[%s1 + $0x28] sm:$0xff]
        %v249 = vld [vmem:[%s1 + $0x30] sm:$0xff]
        %v250 = vld [vmem:[%s1 + $0x38] sm:$0xff]
        %v251 = vld [vmem:[%s2] sm:$0xff]
        %v252 = vld [vmem:[%s2 + $0x8] sm:$0xff]
        %v253 = vld [vmem:[%s2 + $0x10] sm:$0xff]
        %v254 = vld [vmem:[%s2 + $0x18] sm:$0xff]
        %v255 = vld [vmem:[%s2 + $0x20] sm:$0xff]
        %v256 = vld [vmem:[%s2 + $0x28] sm:$0xff]
        %v257 = vld [vmem:[%s2 + $0x30] sm:$0xff]
        %v258 = vld [vmem:[%s2 + $0x38] sm:$0xff]
        %260 = vset.pattern.permute.xlu0 0
        %261 = vperm.xlu0 %260, %v251
        %v262 = vpop.permute.xlu0 %261
        %265 = vset.pattern.permute.xlu0 0
        %266 = vperm.xlu0 %265, %v252
        %v267 = vpop.permute.xlu0 %266
        %270 = vset.pattern.permute.xlu0 0
        %271 = vperm.xlu0 %270, %v253
        %v272 = vpop.permute.xlu0 %271
        %275 = vset.pattern.permute.xlu0 0
        %276 = vperm.xlu0 %275, %v254
        %v277 = vpop.permute.xlu0 %276
        %280 = vset.pattern.permute.xlu0 0
        %281 = vperm.xlu0 %280, %v255
        %v282 = vpop.permute.xlu0 %281
        %285 = vset.pattern.permute.xlu0 0
        %286 = vperm.xlu0 %285, %v256
        %v287 = vpop.permute.xlu0 %286
        %290 = vset.pattern.permute.xlu0 0
        %291 = vperm.xlu0 %290, %v257
        %v292 = vpop.permute.xlu0 %291
        %295 = vset.pattern.permute.xlu0 0
        %296 = vperm.xlu0 %295, %v258
        %v297 = vpop.permute.xlu0 %296
        %v301 = vcombine.high %v241, %v241
        %v302 = vcombine.high %v242, %v242
        %vm303 = vcmask 31744
        %v305 = vsel %vm303, %v243, 0
        %v308 = vsel %vm303, %v244, 0
        %v311 = vsel %vm303, %v245, 0
        %v314 = vsel %vm303, %v246, 0
        %v317 = vsel %vm303, %v247, 0
        %v320 = vsel %vm303, %v248, 0
        %v323 = vsel %vm303, %v249, 0
        %v326 = vsel %vm303, %v250, 0
        %vm328 = vcmask 1043456
        %v329 = vsel %vm328, %v241, 0
        %v331 = vsel %vm328, %v301, 0
        %v333 = vsel %vm328, %v242, 0
        %v335 = vsel %vm328, %v302, 0
        %337 = vmatprep.subr.mxu0 0.0
        %338 = vmatpush1.msra.mxu0 0.0
        %339 = vmatprep.subr.mxu0 0.0
        %340 = vmatpush1.msra.mxu0 0.0
        %341 = vmatprep.subr.mxu0 0.0
        %342 = vmatpush1.msra.mxu0 0.0
        %343 = vmatprep.subr.mxu0 0.0
        %344 = vmatpush1.msra.mxu0 0.0
        %345 = vmatprep.subr.mxu0 0.0
        %346 = vmatpush1.msra.mxu0 0.0
        %347 = vmatprep.subr.mxu0 0.0
        %348 = vmatpush1.msra.mxu0 0.0
        %349 = vmatprep.subr.mxu0 0.0
        %350 = vmatpush1.msra.mxu0 0.0
        %351 = vmatprep.subr.mxu0 0.0
        %352 = vmatpush1.msra.mxu0 0.0
        %353 = vmatprep.subr.mxu0 0.0
        %354 = vmatpush1.msra.mxu0 0.0
        %355 = vmatprep.subr.mxu0 0.0
        %356 = vmatpush1.msra.mxu0 0.0
        %357 = vmatprep.subr.mxu0 0.0
        %358 = vmatpush1.msra.mxu0 0.0
        %359 = vmatprep.subr.mxu0 0.0
        %360 = vmatpush1.msra.mxu0 0.0
        %361 = vmatprep.subr.mxu0 0.0
        %362 = vmatpush1.msra.mxu0 0.0
        %363 = vmatprep.subr.mxu0 0.0
        %364 = vmatpush1.msra.mxu0 0.0
        %365 = vmatprep.subr.mxu0 0.0
        %366 = vmatpush1.msra.mxu0 0.0
        %367 = vmatprep.subr.mxu0 %v331
        %368 = vmatpush1.msra.mxu0 %v329
        %369 = vmatprep.subr.mxu0 0.0
        %370 = vmatpush2.msra.mxu0 0.0
        %371 = vmatprep.subr.mxu0 0.0
        %372 = vmatpush2.msra.mxu0 0.0
        %373 = vmatprep.subr.mxu0 0.0
        %374 = vmatpush2.msra.mxu0 0.0
        %375 = vmatprep.subr.mxu0 0.0
        %376 = vmatpush2.msra.mxu0 0.0
        %377 = vmatprep.subr.mxu0 0.0
        %378 = vmatpush2.msra.mxu0 0.0
        %379 = vmatprep.subr.mxu0 0.0
        %380 = vmatpush2.msra.mxu0 0.0
        %381 = vmatprep.subr.mxu0 0.0
        %382 = vmatpush2.msra.mxu0 0.0
        %383 = vmatprep.subr.mxu0 0.0
        %384 = vmatpush2.msra.mxu0 0.0
        %385 = vmatprep.subr.mxu0 0.0
        %386 = vmatpush2.msra.mxu0 0.0
        %387 = vmatprep.subr.mxu0 0.0
        %388 = vmatpush2.msra.mxu0 0.0
        %389 = vmatprep.subr.mxu0 0.0
        %390 = vmatpush2.msra.mxu0 0.0
        %391 = vmatprep.subr.mxu0 0.0
        %392 = vmatpush2.msra.mxu0 0.0
        %393 = vmatprep.subr.mxu0 0.0
        %394 = vmatpush2.msra.mxu0 0.0
        %395 = vmatprep.subr.mxu0 0.0
        %396 = vmatpush2.msra.mxu0 0.0
        %397 = vmatprep.subr.mxu0 0.0
        %398 = vmatpush2.msra.mxu0 0.0
        %399 = vmatprep.subr.mxu0 0.0
        %400 = vmatpush2.msra.mxu0 0.0
        %401 = vmatprep.mubr.f32.mxu0 0.0
        %402 = vmatmul.mubr.f32.gmra.mxu0 %v305
        %v403 = vpop.f32.mrf.mxu0
        %v404 = vadd.f32 %v262, %v403
        %v405 = vpop.f32.mrf.mxu0
        %v406 = vadd.f32 %v262, %v405
        %407 = vmatprep.mubr.f32.mxu0 0.0
        %408 = vmatmul.mubr.f32.gmra.mxu0 %v308
        %v409 = vpop.f32.mrf.mxu0
        %v410 = vadd.f32 %v267, %v409
        %v411 = vpop.f32.mrf.mxu0
        %v412 = vadd.f32 %v267, %v411
        %413 = vmatprep.mubr.f32.mxu0 0.0
        %414 = vmatmul.mubr.f32.gmra.mxu0 %v311
        %v415 = vpop.f32.mrf.mxu0
        %v416 = vadd.f32 %v272, %v415
        %v417 = vpop.f32.mrf.mxu0
        %v418 = vadd.f32 %v272, %v417
        %419 = vmatprep.mubr.f32.mxu0 0.0
        %420 = vmatmul.mubr.f32.gmra.mxu0 %v314
        %v421 = vpop.f32.mrf.mxu0
        %v422 = vadd.f32 %v277, %v421
        %v423 = vpop.f32.mrf.mxu0
        %v424 = vadd.f32 %v277, %v423
        %425 = vmatprep.mubr.f32.mxu0 0.0
        %426 = vmatmul.mubr.f32.gmra.mxu0 %v317
        %v427 = vpop.f32.mrf.mxu0
        %v428 = vadd.f32 %v282, %v427
        %v429 = vpop.f32.mrf.mxu0
        %v430 = vadd.f32 %v282, %v429
        %431 = vmatprep.mubr.f32.mxu0 0.0
        %432 = vmatmul.mubr.f32.gmra.mxu0 %v320
        %v433 = vpop.f32.mrf.mxu0
        %v434 = vadd.f32 %v287, %v433
        %v435 = vpop.f32.mrf.mxu0
        %v436 = vadd.f32 %v287, %v435
        %437 = vmatprep.mubr.f32.mxu0 0.0
        %438 = vmatmul.mubr.f32.gmra.mxu0 %v323
        %v439 = vpop.f32.mrf.mxu0
        %v440 = vadd.f32 %v292, %v439
        %v441 = vpop.f32.mrf.mxu0
        %v442 = vadd.f32 %v292, %v441
        %443 = vmatprep.mubr.f32.mxu0 0.0
        %444 = vmatmul.mubr.f32.gmra.mxu0 %v326
        %v445 = vpop.f32.mrf.mxu0
        %v446 = vadd.f32 %v297, %v445
        %v447 = vpop.f32.mrf.mxu0
        %v448 = vadd.f32 %v297, %v447
        %449 = vdwg.mxu0
        %450 = vmatprep.subr.mxu0 0.0
        %451 = vmatpush1.msra.mxu0 0.0
        %452 = vmatprep.subr.mxu0 0.0
        %453 = vmatpush1.msra.mxu0 0.0
        %454 = vmatprep.subr.mxu0 0.0
        %455 = vmatpush1.msra.mxu0 0.0
        %456 = vmatprep.subr.mxu0 0.0
        %457 = vmatpush1.msra.mxu0 0.0
        %458 = vmatprep.subr.mxu0 0.0
        %459 = vmatpush1.msra.mxu0 0.0
        %460 = vmatprep.subr.mxu0 0.0
        %461 = vmatpush1.msra.mxu0 0.0
        %462 = vmatprep.subr.mxu0 0.0
        %463 = vmatpush1.msra.mxu0 0.0
        %464 = vmatprep.subr.mxu0 0.0
        %465 = vmatpush1.msra.mxu0 0.0
        %466 = vmatprep.subr.mxu0 0.0
        %467 = vmatpush1.msra.mxu0 0.0
        %468 = vmatprep.subr.mxu0 0.0
        %469 = vmatpush1.msra.mxu0 0.0
        %470 = vmatprep.subr.mxu0 0.0
        %471 = vmatpush1.msra.mxu0 0.0
        %472 = vmatprep.subr.mxu0 0.0
        %473 = vmatpush1.msra.mxu0 0.0
        %474 = vmatprep.subr.mxu0 0.0
        %475 = vmatpush1.msra.mxu0 0.0
        %476 = vmatprep.subr.mxu0 0.0
        %477 = vmatpush1.msra.mxu0 0.0
        %478 = vmatprep.subr.mxu0 0.0
        %479 = vmatpush1.msra.mxu0 0.0
        %480 = vmatprep.subr.mxu0 %v335
        %481 = vmatpush1.msra.mxu0 %v333
        %482 = vmatprep.subr.mxu0 0.0
        %483 = vmatpush2.msra.mxu0 0.0
        %484 = vmatprep.subr.mxu0 0.0
        %485 = vmatpush2.msra.mxu0 0.0
        %486 = vmatprep.subr.mxu0 0.0
        %487 = vmatpush2.msra.mxu0 0.0
        %488 = vmatprep.subr.mxu0 0.0
        %489 = vmatpush2.msra.mxu0 0.0
        %490 = vmatprep.subr.mxu0 0.0
        %491 = vmatpush2.msra.mxu0 0.0
        %492 = vmatprep.subr.mxu0 0.0
        %493 = vmatpush2.msra.mxu0 0.0
        %494 = vmatprep.subr.mxu0 0.0
        %495 = vmatpush2.msra.mxu0 0.0
        %496 = vmatprep.subr.mxu0 0.0
        %497 = vmatpush2.msra.mxu0 0.0
        %498 = vmatprep.subr.mxu0 0.0
        %499 = vmatpush2.msra.mxu0 0.0
        %500 = vmatprep.subr.mxu0 0.0
        %501 = vmatpush2.msra.mxu0 0.0
        %502 = vmatprep.subr.mxu0 0.0
        %503 = vmatpush2.msra.mxu0 0.0
        %504 = vmatprep.subr.mxu0 0.0
        %505 = vmatpush2.msra.mxu0 0.0
        %506 = vmatprep.subr.mxu0 0.0
        %507 = vmatpush2.msra.mxu0 0.0
        %508 = vmatprep.subr.mxu0 0.0
        %509 = vmatpush2.msra.mxu0 0.0
        %510 = vmatprep.subr.mxu0 0.0
        %511 = vmatpush2.msra.mxu0 0.0
        %512 = vmatprep.subr.mxu0 0.0
        %513 = vmatpush2.msra.mxu0 0.0
        %514 = vmatprep.mubr.f32.mxu0 0.0
        %515 = vmatmul.mubr.f32.gmra.mxu0 %v305
        %v516 = vpop.f32.mrf.mxu0
        %v517 = vadd.f32 %v262, %v516
        %v518 = vpop.f32.mrf.mxu0
        %v519 = vadd.f32 %v262, %v518
        %520 = vmatprep.mubr.f32.mxu0 0.0
        %521 = vmatmul.mubr.f32.gmra.mxu0 %v308
        %v522 = vpop.f32.mrf.mxu0
        %v523 = vadd.f32 %v267, %v522
        %v524 = vpop.f32.mrf.mxu0
        %v525 = vadd.f32 %v267, %v524
        %526 = vmatprep.mubr.f32.mxu0 0.0
        %527 = vmatmul.mubr.f32.gmra.mxu0 %v311
        %v528 = vpop.f32.mrf.mxu0
        %v529 = vadd.f32 %v272, %v528
        %v530 = vpop.f32.mrf.mxu0
        %v531 = vadd.f32 %v272, %v530
        %532 = vmatprep.mubr.f32.mxu0 0.0
        %533 = vmatmul.mubr.f32.gmra.mxu0 %v314
        %v534 = vpop.f32.mrf.mxu0
        %v535 = vadd.f32 %v277, %v534
        %v536 = vpop.f32.mrf.mxu0
        %v537 = vadd.f32 %v277, %v536
        %538 = vmatprep.mubr.f32.mxu0 0.0
        %539 = vmatmul.mubr.f32.gmra.mxu0 %v317
        %v540 = vpop.f32.mrf.mxu0
        %v541 = vadd.f32 %v282, %v540
        %v542 = vpop.f32.mrf.mxu0
        %v543 = vadd.f32 %v282, %v542
        %544 = vmatprep.mubr.f32.mxu0 0.0
        %545 = vmatmul.mubr.f32.gmra.mxu0 %v320
        %v546 = vpop.f32.mrf.mxu0
        %v547 = vadd.f32 %v287, %v546
        %v548 = vpop.f32.mrf.mxu0
        %v549 = vadd.f32 %v287, %v548
        %550 = vmatprep.mubr.f32.mxu0 0.0
        %551 = vmatmul.mubr.f32.gmra.mxu0 %v323
        %v552 = vpop.f32.mrf.mxu0
        %v553 = vadd.f32 %v292, %v552
        %v554 = vpop.f32.mrf.mxu0
        %v555 = vadd.f32 %v292, %v554
        %556 = vmatprep.mubr.f32.mxu0 0.0
        %557 = vmatmul.mubr.f32.gmra.mxu0 %v326
        %v558 = vpop.f32.mrf.mxu0
        %v559 = vadd.f32 %v297, %v558
        %v560 = vpop.f32.mrf.mxu0
        %v561 = vadd.f32 %v297, %v560
        %562 = vdwg.mxu0
        %v563 = vmul.f32 %v404, %v404
        %v564 = vmul.f32 %v406, %v406
        %v565 = vmul.f32 %v517, %v517
        %v566 = vmul.f32 %v519, %v519
        %v567 = vmul.f32 %v410, %v410
        %v568 = vmul.f32 %v412, %v412
        %v569 = vmul.f32 %v523, %v523
        %v570 = vmul.f32 %v525, %v525
        %v571 = vmul.f32 %v416, %v416
        %v572 = vmul.f32 %v418, %v418
        %v573 = vmul.f32 %v529, %v529
        %v574 = vmul.f32 %v531, %v531
        %v575 = vmul.f32 %v422, %v422
        %v576 = vmul.f32 %v424, %v424
        %v577 = vmul.f32 %v535, %v535
        %v578 = vmul.f32 %v537, %v537
        %v579 = vadd.f32 %v563, %v567
        %v580 = vadd.f32 %v579, %v571
        %v581 = vadd.f32 %v580, %v575
        %v582 = vrot.slane %v581, 4
        %v583 = vadd.f32 %v581, %v582
        %v584 = vrot.slane %v583, 2
        %v585 = vadd.f32 %v583, %v584
        %v586 = vrot.slane %v585, 1
        %v587 = vadd.f32 %v585, %v586
        %v588 = vadd.f32 %v564, %v568
        %v589 = vadd.f32 %v588, %v572
        %v590 = vadd.f32 %v589, %v576
        %v591 = vrot.slane %v590, 4
        %v592 = vadd.f32 %v590, %v591
        %v593 = vrot.slane %v592, 2
        %v594 = vadd.f32 %v592, %v593
        %v595 = vrot.slane %v594, 1
        %v596 = vadd.f32 %v594, %v595
        %v597 = vadd.f32 %v565, %v569
        %v598 = vadd.f32 %v597, %v573
        %v599 = vadd.f32 %v598, %v577
        %v600 = vrot.slane %v599, 4
        %v601 = vadd.f32 %v599, %v600
        %v602 = vrot.slane %v601, 2
        %v603 = vadd.f32 %v601, %v602
        %v604 = vrot.slane %v603, 1
        %v605 = vadd.f32 %v603, %v604
        %v606 = vadd.f32 %v566, %v570
        %v607 = vadd.f32 %v606, %v574
        %v608 = vadd.f32 %v607, %v578
        %v609 = vrot.slane %v608, 4
        %v610 = vadd.f32 %v608, %v609
        %v611 = vrot.slane %v610, 2
        %v612 = vadd.f32 %v610, %v611
        %v613 = vrot.slane %v612, 1
        %v614 = vadd.f32 %v612, %v613
        %v615 = vmul.f32 %v428, %v428
        %v616 = vmul.f32 %v430, %v430
        %v617 = vmul.f32 %v541, %v541
        %v618 = vmul.f32 %v543, %v543
        %v619 = vmul.f32 %v434, %v434
        %v620 = vmul.f32 %v436, %v436
        %v621 = vmul.f32 %v547, %v547
        %v622 = vmul.f32 %v549, %v549
        %v623 = vmul.f32 %v440, %v440
        %v624 = vmul.f32 %v442, %v442
        %v625 = vmul.f32 %v553, %v553
        %v626 = vmul.f32 %v555, %v555
        %v627 = vmul.f32 %v446, %v446
        %v628 = vmul.f32 %v448, %v448
        %v629 = vmul.f32 %v559, %v559
        %v630 = vmul.f32 %v561, %v561
        %v631 = vadd.f32 %v615, %v619
        %v632 = vadd.f32 %v631, %v623
        %v633 = vadd.f32 %v632, %v627
        %v634 = vrot.slane %v633, 4
        %v635 = vadd.f32 %v633, %v634
        %v636 = vrot.slane %v635, 2
        %v637 = vadd.f32 %v635, %v636
        %v638 = vrot.slane %v637, 1
        %v639 = vadd.f32 %v637, %v638
        %v640 = vadd.f32 %v616, %v620
        %v641 = vadd.f32 %v640, %v624
        %v642 = vadd.f32 %v641, %v628
        %v643 = vrot.slane %v642, 4
        %v644 = vadd.f32 %v642, %v643
        %v645 = vrot.slane %v644, 2
        %v646 = vadd.f32 %v644, %v645
        %v647 = vrot.slane %v646, 1
        %v648 = vadd.f32 %v646, %v647
        %v649 = vadd.f32 %v617, %v621
        %v650 = vadd.f32 %v649, %v625
        %v651 = vadd.f32 %v650, %v629
        %v652 = vrot.slane %v651, 4
        %v653 = vadd.f32 %v651, %v652
        %v654 = vrot.slane %v653, 2
        %v655 = vadd.f32 %v653, %v654
        %v656 = vrot.slane %v655, 1
        %v657 = vadd.f32 %v655, %v656
        %v658 = vadd.f32 %v618, %v622
        %v659 = vadd.f32 %v658, %v626
        %v660 = vadd.f32 %v659, %v630
        %v661 = vrot.slane %v660, 4
        %v662 = vadd.f32 %v660, %v661
        %v663 = vrot.slane %v662, 2
        %v664 = vadd.f32 %v662, %v663
        %v665 = vrot.slane %v664, 1
        %v666 = vadd.f32 %v664, %v665
        %v667 = vmax.f32 %v587, 1e-24
        %v668 = vmax.f32 %v596, 1e-24
        %v669 = vmax.f32 %v605, 1e-24
        %v670 = vmax.f32 %v614, 1e-24
        %v671 = vrsqrt.pop %v667
        %v672 = vrsqrt.pop %v668
        %v673 = vrsqrt.pop %v669
        %v674 = vrsqrt.pop %v670
        %v675 = vmul.f32 %v404, %v671
        %v676 = vmul.f32 %v406, %v672
        %v677 = vmul.f32 %v517, %v673
        %v678 = vmul.f32 %v519, %v674
        %v679 = vmul.f32 %v410, %v671
        %v680 = vmul.f32 %v412, %v672
        %v681 = vmul.f32 %v523, %v673
        %v682 = vmul.f32 %v525, %v674
        %v683 = vmul.f32 %v416, %v671
        %v684 = vmul.f32 %v418, %v672
        %v685 = vmul.f32 %v529, %v673
        %v686 = vmul.f32 %v531, %v674
        %v687 = vmul.f32 %v422, %v671
        %v688 = vmul.f32 %v424, %v672
        %v689 = vmul.f32 %v535, %v673
        %v690 = vmul.f32 %v537, %v674
        %691 = vst [vmem:[%s221] sm:$0xff] %v675
        %692 = vst [vmem:[%s221 + $0x8] sm:$0xff] %v676
        %693 = vst [vmem:[%s221 + $0x10] sm:$0xff] %v677
        %694 = vst [vmem:[%s221 + $0x18] sm:$0xff] %v678
        %695 = vst [vmem:[%s221 + $0x20] sm:$0xff] %v679
        %696 = vst [vmem:[%s221 + $0x28] sm:$0xff] %v680
        %697 = vst [vmem:[%s221 + $0x30] sm:$0xff] %v681
        %698 = vst [vmem:[%s221 + $0x38] sm:$0xff] %v682
        %699 = vst [vmem:[%s221 + $0x40] sm:$0xff] %v683
        %700 = vst [vmem:[%s221 + $0x48] sm:$0xff] %v684
        %701 = vst [vmem:[%s221 + $0x50] sm:$0xff] %v685
        %702 = vst [vmem:[%s221 + $0x58] sm:$0xff] %v686
        %703 = vst [vmem:[%s221 + $0x60] sm:$0xff] %v687
        %704 = vst [vmem:[%s221 + $0x68] sm:$0xff] %v688
        %705 = vst [vmem:[%s221 + $0x70] sm:$0xff] %v689
        %706 = vst [vmem:[%s221 + $0x78] sm:$0xff] %v690
        %v707 = vmax.f32 %v639, 1e-24
        %v708 = vmax.f32 %v648, 1e-24
        %v709 = vmax.f32 %v657, 1e-24
        %v710 = vmax.f32 %v666, 1e-24
        %v711 = vrsqrt.pop %v707
        %v712 = vrsqrt.pop %v708
        %v713 = vrsqrt.pop %v709
        %v714 = vrsqrt.pop %v710
        %v715 = vmul.f32 %v428, %v711
        %v716 = vmul.f32 %v430, %v712
        %v717 = vmul.f32 %v541, %v713
        %v718 = vmul.f32 %v543, %v714
        %v719 = vmul.f32 %v434, %v711
        %v720 = vmul.f32 %v436, %v712
        %v721 = vmul.f32 %v547, %v713
        %v722 = vmul.f32 %v549, %v714
        %v723 = vmul.f32 %v440, %v711
        %v724 = vmul.f32 %v442, %v712
        %v725 = vmul.f32 %v553, %v713
        %v726 = vmul.f32 %v555, %v714
        %v727 = vmul.f32 %v446, %v711
        %v728 = vmul.f32 %v448, %v712
        %v729 = vmul.f32 %v559, %v713
        %v730 = vmul.f32 %v561, %v714
        %731 = vst [vmem:[%s228] sm:$0xff] %v715
        %732 = vst [vmem:[%s228 + $0x8] sm:$0xff] %v716
        %733 = vst [vmem:[%s228 + $0x10] sm:$0xff] %v717
        %734 = vst [vmem:[%s228 + $0x18] sm:$0xff] %v718
        %735 = vst [vmem:[%s228 + $0x20] sm:$0xff] %v719
        %736 = vst [vmem:[%s228 + $0x28] sm:$0xff] %v720
        %737 = vst [vmem:[%s228 + $0x30] sm:$0xff] %v721
        %738 = vst [vmem:[%s228 + $0x38] sm:$0xff] %v722
        %739 = vst [vmem:[%s228 + $0x40] sm:$0xff] %v723
        %740 = vst [vmem:[%s228 + $0x48] sm:$0xff] %v724
        %741 = vst [vmem:[%s228 + $0x50] sm:$0xff] %v725
        %742 = vst [vmem:[%s228 + $0x58] sm:$0xff] %v726
        %743 = vst [vmem:[%s228 + $0x60] sm:$0xff] %v727
        %744 = vst [vmem:[%s228 + $0x68] sm:$0xff] %v728
        %745 = vst [vmem:[%s228 + $0x70] sm:$0xff] %v729
        %746 = vst [vmem:[%s228 + $0x78] sm:$0xff] %v730
        %s747 = sand.u32 %s114, 1
        %s748 = scalar_lea.sflag [#allocation3], %s747
        %s749 = sand.u32 %s114, 1
        %s750 = smul.addr %s749, 128
        %s751 = scalar_lea.vmem [#allocation2], %s750
        %s752 = sand.u32 %s142, 1
        %s753 = scalar_lea.sflag [#allocation5], %s752
        %s754 = sand.u32 %s142, 1
        %s755 = smul.addr %s754, 128
        %s756 = scalar_lea.vmem [#allocation4], %s755
        // Predicated region
        $region33: #{tpu_custom_call.1} parent=31 // pred_check
          %p757 = pneg %p124
        $region34: #{tpu_custom_call.1} parent=31 // pred_check_branch
          %759 = sbr.rel (%p757) target = $region36
        $region35: #{tpu_custom_call.1} parent=31 // pred_region
          %s760 = smul.u32 4, %s27
          %s762 = ssub.s32 2048, 2048
          %763 = vsyncadd %s748, %s762
          %s764 = smul.addr %s26, 16
          %s765 = sadd.s32 %s760, %s764
          %s766 = smul.addr %s765, 128
          %s767 = scalar_lea.hbm %s3, %s766
          %s768 = sshll.u32 %s751, 4
          %s769 = int_to_ptr.vmem [resolvable:$true] %s768
          %774 = dma.vmem_to_hbm [thread:$0]  %s769, 2048, %s767, %s748, 512, 512, 32
        $region36: #{tpu_custom_call.1} parent=31 // pred_fallthru
          _
        // Predicated region
        $region37: #{tpu_custom_call.1} parent=31 // pred_check
          %p775 = pneg %p152
        $region38: #{tpu_custom_call.1} parent=31 // pred_check_branch
          %777 = sbr.rel (%p775) target = $region40
        $region39: #{tpu_custom_call.1} parent=31 // pred_region
          %s778 = smul.u32 4, %s27
          %s780 = ssub.s32 2048, 2048
          %781 = vsyncadd %s753, %s780
          %s782 = smul.addr %s26, 16
          %s783 = sadd.s32 %s778, %s782
          %s784 = smul.addr %s783, 128
          %s785 = scalar_lea.hbm %s4, %s784
          %s786 = sshll.u32 %s756, 4
          %s787 = int_to_ptr.vmem [resolvable:$true] %s786
          %792 = dma.vmem_to_hbm [thread:$0]  %s787, 2048, %s785, %s753, 512, 512, 32
        $region40: #{tpu_custom_call.1} parent=31 // pred_fallthru
          _
      $region32: #{tpu_custom_call.1} parent=5 // pred_fallthru
        _
      %p793 = scmp.le.s32.totalorder 2, %s17
      // Predicated region
      $region41: #{tpu_custom_call.1} parent=5 // pred_check
        %p794 = pneg %p793
      $region42: #{tpu_custom_call.1} parent=5 // pred_check_branch
        %796 = sbr.rel (%p794) target = $region44
      $region43: #{tpu_custom_call.1} parent=5 // pred_region
        %s797 = ssub.s32 %s17, 2
        // Predicated region
        $region45: #{tpu_custom_call.1} parent=43 // pred_check
          %p798 = pneg %p130
        $region46: #{tpu_custom_call.1} parent=43 // pred_check_branch
          %800 = sbr.rel (%p798) target = $region48
        $region47: #{tpu_custom_call.1} parent=43 // pred_region
          %s801 = sand.u32 %s115, 1
          %s802 = scalar_lea.sflag [#allocation3], %s801
          %s803 = sand.u32 %s115, 1
          %s804 = smul.addr %s803, 128
          %s805 = scalar_lea.vmem [#allocation2], %s804
          %806 = dma.done %s802, 2048
        $region48: #{tpu_custom_call.1} parent=43 // pred_fallthru
          _
        // Predicated region
        $region49: #{tpu_custom_call.1} parent=43 // pred_check
          %p807 = pneg %p158
        $region50: #{tpu_custom_call.1} parent=43 // pred_check_branch
          %809 = sbr.rel (%p807) target = $region52
        $region51: #{tpu_custom_call.1} parent=43 // pred_region
          %s810 = sand.u32 %s143, 1
          %s811 = scalar_lea.sflag [#allocation5], %s810
          %s812 = sand.u32 %s143, 1
          %s813 = smul.addr %s812, 128
          %s814 = scalar_lea.vmem [#allocation4], %s813
          %815 = dma.done %s811, 2048
        $region52: #{tpu_custom_call.1} parent=43 // pred_fallthru
          _
      $region44: #{tpu_custom_call.1} parent=5 // pred_fallthru
        _
    $region6: #{tpu_custom_call.1} parent=1 // loop_footer
      %s21 = sadd.s32 1, %s17
    $region7: #{tpu_custom_call.1} parent=1 // loop_footer_branch
      %16 = sbr.rel target = $region3
    $region8: #{tpu_custom_call.1} parent=1 // loop_exit
      _
    %816 = vsyncpa [#allocation3], 1
    %s817 = scalar_lea.sflag [#allocation3], 1
    %818 = vsyncpa %s817, 1
    %819 = vsyncpa [#allocation5], 1
    %s820 = scalar_lea.sflag [#allocation5], 1
    %821 = vsyncpa %s820, 1

</llo_original>
